<compile_context>
chip_gen: v7x
topology: tpu7x:2x2x1
jax: 0.10.0
libtpu: 0.0.40
codegen_flags: <defaults>
</compile_context>

<pallas_src>
import jax
import jax.numpy as jnp
from jax.experimental import pallas as pl
from jax.experimental.pallas import tpu as pltpu

C = 320          # fixed by nn.Linear(320, 1)
LANE = 128
_C_CHUNK = 64    # channel chunk for the score reduction (bounds live VMEM temps)


# ----------------------------------------------------------------------------
# shared in-kernel score computation
# ----------------------------------------------------------------------------
def _block_scores(x_ref, w_ref, bias):
    """Linear(320 -> 1) over the channel axis of a (bb, C, Lt) block.

    Chunked over C so the broadcast product never materializes a block-sized
    f32 temp (largest live temp is bb * _C_CHUNK * Lt floats = block/5).
    VPU broadcast-multiply + XLU sublane reduce; no MXU matvec, no transpose.
    """
    bb, _, lt = x_ref.shape
    acc = jnp.zeros((bb, lt), jnp.float32)
    for c0 in range(0, C, _C_CHUNK):
        xc = x_ref[:, c0:c0 + _C_CHUNK, :].astype(jnp.float32)   # (bb, 64, lt)
        wc = w_ref[c0:c0 + _C_CHUNK, :]                          # (64, 1)
        acc = acc + jnp.sum(xc * wc[None, :, :], axis=1)         # XLU sublane reduce
    return acc + bias                                            # (bb, lt)


# ----------------------------------------------------------------------------
# fused single-block-over-L kernel (default path)
# ----------------------------------------------------------------------------
def _fused_kernel(x_ref, w_ref, b_ref, o_ref):
    # x_ref / o_ref: (bb, C, L) VMEM; w_ref: (C, 1) VMEM; b_ref: (1, 1) SMEM.
    s = _block_scores(x_ref, w_ref, b_ref[0, 0])[:, None, :]     # (bb, 1, L)
    m = jnp.max(s, axis=-1, keepdims=True)                       # (bb, 1, 1)
    e = jnp.exp(s - m)
    a = e / jnp.sum(e, axis=-1, keepdims=True)                   # exact softmax
    o_ref[...] = (x_ref[...].astype(jnp.float32) * a).astype(o_ref.dtype)


# ----------------------------------------------------------------------------
# L-tiled two-pass online-softmax path (long sequences)
# ----------------------------------------------------------------------------
def _make_scores_kernel(l_valid, l_tile):
    ragged = (l_valid % l_tile) != 0

    def scores_kernel(x_ref, w_ref, b_ref, s_ref, m_ref, l_ref):
        j = pl.program_id(1)

        @pl.when(j == 0)
        def _():
            m_ref[...] = jnp.full(m_ref.shape, -jnp.inf, m_ref.dtype)
            l_ref[...] = jnp.zeros(l_ref.shape, l_ref.dtype)

        s = _block_scores(x_ref, w_ref, b_ref[0, 0])             # (bb, Lt)
        if ragged:
            col = j * l_tile + jax.lax.broadcasted_iota(jnp.int32, s.shape, 1)
            s = jnp.where(col < l_valid, s, -jnp.inf)            # kill padded lanes
        s3 = s[:, None, :]                                       # (bb, 1, Lt)
        s_ref[...] = s3

        m_prev = m_ref[...]                                      # (bb, 1, 1)
        m_new = jnp.maximum(m_prev, jnp.max(s3, axis=-1, keepdims=True))
        l_ref[...] = (l_ref[...] * jnp.exp(m_prev - m_new)
                      + jnp.sum(jnp.exp(s3 - m_new), axis=-1, keepdims=True))
        m_ref[...] = m_new

    return scores_kernel


def _apply_kernel(x_ref, s_ref, m_ref, l_ref, o_ref):
    a = jnp.exp(s_ref[...] - m_ref[...]) / l_ref[...]            # (bb, 1, Lt)
    o_ref[...] = (x_ref[...].astype(jnp.float32) * a).astype(o_ref.dtype)


# ----------------------------------------------------------------------------
# wrapper
# ----------------------------------------------------------------------------
def _vmem_capacity_bytes():
    try:
        info = pltpu.get_tpu_info()
        for name in ("vmem_capacity_bytes", "vmem_bytes", "vmem_size_bytes"):
            v = getattr(info, name, None)
            if v:
                return int(v)
    except Exception:
        pass
    return 64 * 1024 * 1024  # conservative fallback (v7x per-TensorCore VMEM)


def _pick_batch_block(b, cap):
    """Largest divisor of b <= cap; fall back to cap if the divisor is tiny."""
    cap = max(1, min(int(b), int(cap)))
    div = 1
    for d in range(cap, 0, -1):
        if b % d == 0:
            div = d
            break
    return div if 2 * div >= cap else cap


def tbinet_attention(x, weight, bias, *, l_tile=None):
    """x: (B, 320, L); weight: (1, 320) torch-Linear layout; bias: (1,)."""
    B, Cc, L = x.shape
    assert Cc == C

    # Weight kept C-major (C on sublanes): matches the VPU broadcast-multiply /
    # XLU sublane-reduce score path, so no transpose is lowered and the tiny
    # weight stays resident via a constant index_map.
    w_col = weight.reshape(C, 1).astype(jnp.float32)
    b_arr = bias.reshape(1, 1).astype(jnp.float32)

    itemsize = jnp.dtype(x.dtype).itemsize

    # Chip-aware VMEM budget and block target.
    vmem_cap = _vmem_capacity_bytes()
    vmem_limit = min(vmem_cap * 3 // 4, 96 * 1024 * 1024)
    block_budget = vmem_limit * 3 // 4           # headroom for temps / regalloc
    if vmem_cap <= 64 * 1024 * 1024:             # v7x (64 MiB / TC)
        target_in_block = 10 * 1024 * 1024
    else:                                        # v5e / v6e (128 MiB)
        target_in_block = 8 * 1024 * 1024

    bytes_per_row = C * L * itemsize             # one (1, C, L) slab in x.dtype
    cost = pl.CostEstimate(flops=int(3 * B * C * L),
                           transcendentals=int(B * L),
                           bytes_accessed=int(2 * B * C * L * itemsize))

    # ---------------- fused single-block path ----------------
    if l_tile is None and 4 * bytes_per_row <= block_budget:
        bb_fit = block_budget // (4 * bytes_per_row)
        bb_target = max(1, target_in_block // bytes_per_row)
        bb = _pick_batch_block(B, min(bb_fit, bb_target))
        grid = (pl.cdiv(B, bb),)

        return pl.pallas_call(
            _fused_kernel,
            out_shape=jax.ShapeDtypeStruct((B, C, L), x.dtype),
            grid_spec=pltpu.PrefetchScalarGridSpec(
                num_scalar_prefetch=0,
                grid=grid,
                in_specs=[
                    pl.BlockSpec((bb, C, L), lambda i: (i, 0, 0)),
                    pl.BlockSpec((C, 1), lambda i: (0, 0)),
                    pl.BlockSpec((1, 1), lambda i: (0, 0),
                                 memory_space=pltpu.MemorySpace.SMEM),
                ],
                out_specs=pl.BlockSpec((bb, C, L), lambda i: (i, 0, 0)),
            ),
            compiler_params=pltpu.CompilerParams(
                dimension_semantics=("parallel",),
                vmem_limit_bytes=int(vmem_limit),
            ),
            cost_estimate=cost,
        )(x, w_col, b_arr)

    # ---------------- L-tiled two-pass online-softmax path ----------------
    if l_tile is None:
        l_tile = (block_budget // (4 * C * itemsize)) // LANE * LANE
        l_tile = max(LANE, l_tile)
    assert l_tile % LANE == 0 or l_tile == L

    bytes_per_row_tile = C * l_tile * itemsize
    bb_fit = max(1, block_budget // (4 * bytes_per_row_tile))
    bb_target = max(1, target_in_block // bytes_per_row_tile)
    bb = _pick_batch_block(B, min(bb_fit, bb_target))
    nb = pl.cdiv(B, bb)
    nl = pl.cdiv(L, l_tile)

    # Pass 1: stream x once, produce raw scores + running softmax max/sum.
    s, m, lsum = pl.pallas_call(
        _make_scores_kernel(L, l_tile),
        out_shape=(jax.ShapeDtypeStruct((B, 1, L), jnp.float32),
                   jax.ShapeDtypeStruct((B, 1, 1), jnp.float32),
                   jax.ShapeDtypeStruct((B, 1, 1), jnp.float32)),
        grid_spec=pltpu.PrefetchScalarGridSpec(
            num_scalar_prefetch=0,
            grid=(nb, nl),
            in_specs=[
                pl.BlockSpec((bb, C, l_tile), lambda i, j: (i, 0, j)),
                pl.BlockSpec((C, 1), lambda i, j: (0, 0)),
                pl.BlockSpec((1, 1), lambda i, j: (0, 0),
                             memory_space=pltpu.MemorySpace.SMEM),
            ],
            out_specs=[
                pl.BlockSpec((bb, 1, l_tile), lambda i, j: (i, 0, j)),
                pl.BlockSpec((bb, 1, 1), lambda i, j: (i, 0, 0)),
                pl.BlockSpec((bb, 1, 1), lambda i, j: (i, 0, 0)),
            ],
        ),
        compiler_params=pltpu.CompilerParams(
            dimension_semantics=("parallel", "arbitrary"),
            vmem_limit_bytes=int(vmem_limit),
        ),
        cost_estimate=pl.CostEstimate(flops=int(2 * B * C * L),
                                      transcendentals=int(2 * B * L),
                                      bytes_accessed=int(B * C * L * itemsize)),
    )(x, w_col, b_arr)

    # Pass 2: stream x again, apply out = x * exp(s - m) / sum.
    return pl.pallas_call(
        _apply_kernel,
        out_shape=jax.ShapeDtypeStruct((B, C, L), x.dtype),
        grid_spec=pltpu.PrefetchScalarGridSpec(
            num_scalar_prefetch=0,
            grid=(nb, nl),
            in_specs=[
                pl.BlockSpec((bb, C, l_tile), lambda i, j: (i, 0, j)),
                pl.BlockSpec((bb, 1, l_tile), lambda i, j: (i, 0, j)),
                pl.BlockSpec((bb, 1, 1), lambda i, j: (i, 0, 0)),
                pl.BlockSpec((bb, 1, 1), lambda i, j: (i, 0, 0)),
            ],
            out_specs=pl.BlockSpec((bb, C, l_tile), lambda i, j: (i, 0, j)),
        ),
        compiler_params=pltpu.CompilerParams(
            dimension_semantics=("parallel", "parallel"),
            vmem_limit_bytes=int(vmem_limit),
        ),
        cost_estimate=pl.CostEstimate(flops=int(2 * B * C * L),
                                      transcendentals=int(B * L),
                                      bytes_accessed=int(2 * B * C * L * itemsize)),
    )(x, s, m, lsum)


def reference_attention(x, weight, bias):
    # Pure-JAX mirror of the PyTorch forward pass.
    s = jnp.einsum("bcl,c->bl", x, weight[0]) + bias[0]          # (B, L)
    a = jax.nn.softmax(s, axis=1)                                # softmax over seq
    return x * a[:, None, :]


if __name__ == "__main__":
    key = jax.random.PRNGKey(0)
    kx, kw, kb, kx2 = jax.random.split(key, 4)

    # torch Linear(320, 1) parameter shapes: weight (1, 320), bias (1,)
    bound = 1.0 / float(jnp.sqrt(jnp.float32(C)))
    weight = jax.random.uniform(kw, (1, C), jnp.float32, -bound, bound)
    bias = jax.random.uniform(kb, (1,), jnp.float32, -bound, bound)

    # 1) fused single-block path (small, lane-ragged L; no pad / slice needed)
    B, L = 2, 16
    x = jax.random.normal(kx, (B, C, L), dtype=jnp.float32)
    out = jax.block_until_ready(tbinet_attention(x, weight, bias))
    ref = reference_attention(x, weight, bias)
    assert out.shape == (B, C, L)
    err = float(jnp.max(jnp.abs(out - ref)))
    assert jnp.allclose(out, ref, atol=1e-4, rtol=1e-4), f"fused path max|err|={err}"

    # 2) forced L-tiled two-pass online-softmax path (ragged tail tile masked)
    B2, L2 = 2, 200
    x2 = jax.random.normal(kx2, (B2, C, L2), dtype=jnp.float32)
    out2 = jax.block_until_ready(tbinet_attention(x2, weight, bias, l_tile=128))
    ref2 = reference_attention(x2, weight, bias)
    assert out2.shape == (B2, C, L2)
    err2 = float(jnp.max(jnp.abs(out2 - ref2)))
    assert jnp.allclose(out2, ref2, atol=1e-4, rtol=1e-4), f"tiled path max|err|={err2}"

    print("KERNEL_OK")
</pallas_src>

<mosaic_0001>
module attributes {stable_mosaic.version = 11 : i64} {
  func.func @_fused_kernel(%arg0: i32, %arg1: memref<2x320x16xf32, #tpu.memory_space<vmem>>, %arg2: memref<320x1xf32, #tpu.memory_space<vmem>>, %arg3: memref<1x1xf32, #tpu.memory_space<smem>>, %arg4: memref<2x320x16xf32, #tpu.memory_space<vmem>>) attributes {dimension_semantics = [#tpu.dimension_semantics<parallel>], iteration_bounds = array<i64: 1>, scalar_prefetch = 0 : i64, scratch_operands = 0 : i64, tpu.core_type = #tpu.core_type<tc>, window_params = [{transform_indices = @transform_0, window_bounds = array<i64: 2, 320, 16>}, {pipeline_mode = #tpu.pipeline_mode<synchronous>, transform_indices = @transform_1, window_bounds = array<i64: 320, 1>}, {transform_indices = @transform_2, window_bounds = array<i64: 1, 1>}, {transform_indices = @transform_3, window_bounds = array<i64: 2, 320, 16>}]} {
    %c0 = arith.constant 0 : index
    %c0_0 = arith.constant 0 : index
    %0 = memref.load %arg3[%c0, %c0_0] : memref<1x1xf32, #tpu.memory_space<smem>>
    %cst = arith.constant 0.000000e+00 : f32
    %1 = vector.broadcast %cst : f32 to vector<2x16xf32>
    %c0_1 = arith.constant 0 : index
    %c0_2 = arith.constant 0 : index
    %c0_3 = arith.constant 0 : index
    %2 = vector.load %arg1[%c0_1, %c0_2, %c0_3] : memref<2x320x16xf32, #tpu.memory_space<vmem>>, vector<2x64x16xf32>
    %c0_4 = arith.constant 0 : index
    %c0_5 = arith.constant 0 : index
    %3 = vector.load %arg2[%c0_4, %c0_5] : memref<320x1xf32, #tpu.memory_space<vmem>>, vector<64x1xf32>
    %4 = vector.shape_cast %3 : vector<64x1xf32> to vector<1x64x1xf32>
    %5 = vector.broadcast %4 : vector<1x64x1xf32> to vector<2x64x16xf32>
    %6 = arith.mulf %2, %5 : vector<2x64x16xf32>
    %cst_6 = arith.constant dense<0.000000e+00> : vector<2x16xf32>
    %7 = vector.multi_reduction <add>, %6, %cst_6 [1] : vector<2x64x16xf32> to vector<2x16xf32>
    %8 = arith.addf %1, %7 : vector<2x16xf32>
    %c0_7 = arith.constant 0 : index
    %c64 = arith.constant 64 : index
    %c0_8 = arith.constant 0 : index
    %9 = vector.load %arg1[%c0_7, %c64, %c0_8] : memref<2x320x16xf32, #tpu.memory_space<vmem>>, vector<2x64x16xf32>
    %c64_9 = arith.constant 64 : index
    %c0_10 = arith.constant 0 : index
    %10 = vector.load %arg2[%c64_9, %c0_10] : memref<320x1xf32, #tpu.memory_space<vmem>>, vector<64x1xf32>
    %11 = vector.shape_cast %10 : vector<64x1xf32> to vector<1x64x1xf32>
    %12 = vector.broadcast %11 : vector<1x64x1xf32> to vector<2x64x16xf32>
    %13 = arith.mulf %9, %12 : vector<2x64x16xf32>
    %cst_11 = arith.constant dense<0.000000e+00> : vector<2x16xf32>
    %14 = vector.multi_reduction <add>, %13, %cst_11 [1] : vector<2x64x16xf32> to vector<2x16xf32>
    %15 = arith.addf %8, %14 : vector<2x16xf32>
    %c0_12 = arith.constant 0 : index
    %c128 = arith.constant 128 : index
    %c0_13 = arith.constant 0 : index
    %16 = vector.load %arg1[%c0_12, %c128, %c0_13] : memref<2x320x16xf32, #tpu.memory_space<vmem>>, vector<2x64x16xf32>
    %c128_14 = arith.constant 128 : index
    %c0_15 = arith.constant 0 : index
    %17 = vector.load %arg2[%c128_14, %c0_15] : memref<320x1xf32, #tpu.memory_space<vmem>>, vector<64x1xf32>
    %18 = vector.shape_cast %17 : vector<64x1xf32> to vector<1x64x1xf32>
    %19 = vector.broadcast %18 : vector<1x64x1xf32> to vector<2x64x16xf32>
    %20 = arith.mulf %16, %19 : vector<2x64x16xf32>
    %cst_16 = arith.constant dense<0.000000e+00> : vector<2x16xf32>
    %21 = vector.multi_reduction <add>, %20, %cst_16 [1] : vector<2x64x16xf32> to vector<2x16xf32>
    %22 = arith.addf %15, %21 : vector<2x16xf32>
    %c0_17 = arith.constant 0 : index
    %c192 = arith.constant 192 : index
    %c0_18 = arith.constant 0 : index
    %23 = vector.load %arg1[%c0_17, %c192, %c0_18] : memref<2x320x16xf32, #tpu.memory_space<vmem>>, vector<2x64x16xf32>
    %c192_19 = arith.constant 192 : index
    %c0_20 = arith.constant 0 : index
    %24 = vector.load %arg2[%c192_19, %c0_20] : memref<320x1xf32, #tpu.memory_space<vmem>>, vector<64x1xf32>
    %25 = vector.shape_cast %24 : vector<64x1xf32> to vector<1x64x1xf32>
    %26 = vector.broadcast %25 : vector<1x64x1xf32> to vector<2x64x16xf32>
    %27 = arith.mulf %23, %26 : vector<2x64x16xf32>
    %cst_21 = arith.constant dense<0.000000e+00> : vector<2x16xf32>
    %28 = vector.multi_reduction <add>, %27, %cst_21 [1] : vector<2x64x16xf32> to vector<2x16xf32>
    %29 = arith.addf %22, %28 : vector<2x16xf32>
    %c0_22 = arith.constant 0 : index
    %c256 = arith.constant 256 : index
    %c0_23 = arith.constant 0 : index
    %30 = vector.load %arg1[%c0_22, %c256, %c0_23] : memref<2x320x16xf32, #tpu.memory_space<vmem>>, vector<2x64x16xf32>
    %c256_24 = arith.constant 256 : index
    %c0_25 = arith.constant 0 : index
    %31 = vector.load %arg2[%c256_24, %c0_25] : memref<320x1xf32, #tpu.memory_space<vmem>>, vector<64x1xf32>
    %32 = vector.shape_cast %31 : vector<64x1xf32> to vector<1x64x1xf32>
    %33 = vector.broadcast %32 : vector<1x64x1xf32> to vector<2x64x16xf32>
    %34 = arith.mulf %30, %33 : vector<2x64x16xf32>
    %cst_26 = arith.constant dense<0.000000e+00> : vector<2x16xf32>
    %35 = vector.multi_reduction <add>, %34, %cst_26 [1] : vector<2x64x16xf32> to vector<2x16xf32>
    %36 = arith.addf %29, %35 : vector<2x16xf32>
    %37 = vector.broadcast %0 : f32 to vector<2x16xf32>
    %38 = arith.addf %36, %37 : vector<2x16xf32>
    %39 = vector.shape_cast %38 : vector<2x16xf32> to vector<2x1x16xf32>
    %cst_27 = arith.constant dense<0xFF800000> : vector<2x1xf32>
    %40 = vector.multi_reduction <maximumf>, %39, %cst_27 [2] : vector<2x1x16xf32> to vector<2x1xf32>
    %41 = vector.shape_cast %40 : vector<2x1xf32> to vector<2x1x1xf32>
    %42 = vector.broadcast %41 : vector<2x1x1xf32> to vector<2x1x16xf32>
    %43 = arith.subf %39, %42 : vector<2x1x16xf32>
    %44 = math.exp %43 : vector<2x1x16xf32>
    %cst_28 = arith.constant dense<0.000000e+00> : vector<2x1xf32>
    %45 = vector.multi_reduction <add>, %44, %cst_28 [2] : vector<2x1x16xf32> to vector<2x1xf32>
    %46 = vector.shape_cast %45 : vector<2x1xf32> to vector<2x1x1xf32>
    %47 = vector.broadcast %46 : vector<2x1x1xf32> to vector<2x1x16xf32>
    %48 = arith.divf %44, %47 : vector<2x1x16xf32>
    %c0_29 = arith.constant 0 : index
    %c0_30 = arith.constant 0 : index
    %c0_31 = arith.constant 0 : index
    %49 = vector.load %arg1[%c0_29, %c0_30, %c0_31] : memref<2x320x16xf32, #tpu.memory_space<vmem>>, vector<2x320x16xf32>
    %50 = vector.broadcast %48 : vector<2x1x16xf32> to vector<2x320x16xf32>
    %51 = arith.mulf %49, %50 : vector<2x320x16xf32>
    %c0_32 = arith.constant 0 : index
    %c0_33 = arith.constant 0 : index
    %c0_34 = arith.constant 0 : index
    %52 = vector.load %arg4[%c0_32, %c0_33, %c0_34] : memref<2x320x16xf32, #tpu.memory_space<vmem>>, vector<2x320x16xf32>
    tpu.vector_store %arg4[%c0_32, %c0_33, %c0_34], %51 {strides = array<i32>} : memref<2x320x16xf32, #tpu.memory_space<vmem>>, vector<2x320x16xf32>,
    return
  }
  func.func @transform_0(%arg0: i32) -> (i32, i32, i32) {
    %c0_i32 = arith.constant 0 : i32
    %c0_i32_0 = arith.constant 0 : i32
    %c0_i32_1 = arith.constant 0 : i32
    return %arg0, %c0_i32, %c0_i32_0 : i32, i32, i32
  }
  func.func @transform_1(%arg0: i32) -> (i32, i32) {
    %c0_i32 = arith.constant 0 : i32
    %c0_i32_0 = arith.constant 0 : i32
    %c0_i32_1 = arith.constant 0 : i32
    return %c0_i32, %c0_i32_0 : i32, i32
  }
  func.func @transform_2(%arg0: i32) -> (i32, i32) {
    %c0_i32 = arith.constant 0 : i32
    %c0_i32_0 = arith.constant 0 : i32
    %c0_i32_1 = arith.constant 0 : i32
    return %c0_i32, %c0_i32_0 : i32, i32
  }
  func.func @transform_3(%arg0: i32) -> (i32, i32, i32) {
    %c0_i32 = arith.constant 0 : i32
    %c0_i32_0 = arith.constant 0 : i32
    %c0_i32_1 = arith.constant 0 : i32
    return %arg0, %c0_i32, %c0_i32_0 : i32, i32, i32
  }
}

</mosaic_0001>

<llo_original>
// kernel: tpu_custom_call.1
$region0: #{tpu_custom_call.1}
  #allocation0 [shape = 'u32[]', space=smem, size = 0x4, offset = 0x4, fixed_abs, tag = 'smem constant byte address 0x4 - core index']
  #allocation1 [shape = 'u32[144,128]{1,0:T(1,128)}', space=vmem, size = 0x12000, scoped, tag = 'internal scratch']
  #allocation2 [shape = 'f32[1,1]{1,0:T(1,128)S(6)}', space=smem, size = 0x200, scoped, tag = 'scoped memory for tpu_custom_call.1']
  %s0 = inlined_call_operand.vmem [shape: f32[2,320,16], index: 0, kind: input, shape index: {}]
  %s1 = inlined_call_operand.vmem [shape: f32[320,1], index: 1, kind: input, shape index: {}]
  %s2 = inlined_call_operand.<no memory space> [shape: f32[1,1], index: 2, kind: input, shape index: {}]
  %s3 = inlined_call_operand.vmem [shape: f32[2,320,16], index: 3, kind: output, shape index: {}]
  %s4 = sld [smem:[#allocation0]]
  $region22: #{tpu_custom_call.1} parent=0
    _
  %s6 = ssub.s32 1, %s4
  %s7 = scalar_select 0, %s6, %s4
  %8 = sst [smem:[#allocation2]] %s2
  // Predicated region
  $region2: #{tpu_custom_call.1} parent=0 // pred_check
    _
  $region3: #{tpu_custom_call.1} parent=0 // pred_check_branch
    %10 = sbr.rel (0) target = $region5
  $region4: #{tpu_custom_call.1} parent=0 // pred_region
    _
  $region5: #{tpu_custom_call.1} parent=0 // pred_fallthru
    _
  // Predicated region
  $region6: #{tpu_custom_call.1} parent=0 // pred_check
    _
  $region7: #{tpu_custom_call.1} parent=0 // pred_check_branch
    %12 = sbr.rel (0) target = $region9
  $region8: #{tpu_custom_call.1} parent=0 // pred_region
    _
  $region9: #{tpu_custom_call.1} parent=0 // pred_fallthru
    _
  // Predicated region
  $region10: #{tpu_custom_call.1} parent=0 // pred_check
    _
  $region11: #{tpu_custom_call.1} parent=0 // pred_check_branch
    %14 = sbr.rel (0) target = $region13
  $region12: #{tpu_custom_call.1} parent=0 // pred_region
    _
  $region13: #{tpu_custom_call.1} parent=0 // pred_fallthru
    _
  %s15 = sld [smem:[#allocation2]]
  %v16 = vld [vmem:[%s0] sm:$0xff]
  %v17 = vld [vmem:[%s0 + $0x8] sm:$0xff]
  %v18 = vld [vmem:[%s0 + $0x10] sm:$0xff]
  %v19 = vld [vmem:[%s0 + $0x18] sm:$0xff]
  %v20 = vld [vmem:[%s0 + $0x20] sm:$0xff]
  %v21 = vld [vmem:[%s0 + $0x28] sm:$0xff]
  %v22 = vld [vmem:[%s0 + $0x30] sm:$0xff]
  %v23 = vld [vmem:[%s0 + $0x38] sm:$0xff]
  %v24 = vld [vmem:[%s0 + $0x140] sm:$0xff]
  %v25 = vld [vmem:[%s0 + $0x148] sm:$0xff]
  %v26 = vld [vmem:[%s0 + $0x150] sm:$0xff]
  %v27 = vld [vmem:[%s0 + $0x158] sm:$0xff]
  %v28 = vld [vmem:[%s0 + $0x160] sm:$0xff]
  %v29 = vld [vmem:[%s0 + $0x168] sm:$0xff]
  %v30 = vld [vmem:[%s0 + $0x170] sm:$0xff]
  %v31 = vld [vmem:[%s0 + $0x178] sm:$0xff]
  %v32 = vld [vmem:[%s1] sm:$0xff]
  %v33 = vld [vmem:[%s1 + $0x8] sm:$0xff]
  %v34 = vld [vmem:[%s1 + $0x10] sm:$0xff]
  %v35 = vld [vmem:[%s1 + $0x18] sm:$0xff]
  %v36 = vld [vmem:[%s1 + $0x20] sm:$0xff]
  %v37 = vld [vmem:[%s1 + $0x28] sm:$0xff]
  %v38 = vld [vmem:[%s1 + $0x30] sm:$0xff]
  %v39 = vld [vmem:[%s1 + $0x38] sm:$0xff]
  %41 = vset.pattern.permute.xlu0 0
  %42 = vperm.xlu0 %41, %v32
  %v43 = vpop.permute.xlu0 %42
  %46 = vset.pattern.permute.xlu0 0
  %47 = vperm.xlu0 %46, %v33
  %v48 = vpop.permute.xlu0 %47
  %51 = vset.pattern.permute.xlu0 0
  %52 = vperm.xlu0 %51, %v34
  %v53 = vpop.permute.xlu0 %52
  %56 = vset.pattern.permute.xlu0 0
  %57 = vperm.xlu0 %56, %v35
  %v58 = vpop.permute.xlu0 %57
  %61 = vset.pattern.permute.xlu0 0
  %62 = vperm.xlu0 %61, %v36
  %v63 = vpop.permute.xlu0 %62
  %66 = vset.pattern.permute.xlu0 0
  %67 = vperm.xlu0 %66, %v37
  %v68 = vpop.permute.xlu0 %67
  %71 = vset.pattern.permute.xlu0 0
  %72 = vperm.xlu0 %71, %v38
  %v73 = vpop.permute.xlu0 %72
  %76 = vset.pattern.permute.xlu0 0
  %77 = vperm.xlu0 %76, %v39
  %v78 = vpop.permute.xlu0 %77
  %v80 = vmul.f32 %v16, %v43
  %v81 = vmul.f32 %v17, %v48
  %v82 = vmul.f32 %v18, %v53
  %v83 = vmul.f32 %v19, %v58
  %v84 = vmul.f32 %v20, %v63
  %v85 = vmul.f32 %v21, %v68
  %v86 = vmul.f32 %v22, %v73
  %v87 = vmul.f32 %v23, %v78
  %v88 = vmul.f32 %v24, %v43
  %v89 = vmul.f32 %v25, %v48
  %v90 = vmul.f32 %v26, %v53
  %v91 = vmul.f32 %v27, %v58
  %v92 = vmul.f32 %v28, %v63
  %v93 = vmul.f32 %v29, %v68
  %v94 = vmul.f32 %v30, %v73
  %v95 = vmul.f32 %v31, %v78
  %vm96 = vcmask 130048
  %v97 = vsel %vm96, %v80, 0.0
  %v98 = vsel %vm96, %v81, 0.0
  %v99 = vadd.f32 %v97, %v98
  %v100 = vsel %vm96, %v82, 0.0
  %v101 = vadd.f32 %v99, %v100
  %v102 = vsel %vm96, %v83, 0.0
  %v103 = vadd.f32 %v101, %v102
  %v104 = vsel %vm96, %v84, 0.0
  %v105 = vadd.f32 %v103, %v104
  %v106 = vsel %vm96, %v85, 0.0
  %v107 = vadd.f32 %v105, %v106
  %v108 = vsel %vm96, %v86, 0.0
  %v109 = vadd.f32 %v107, %v108
  %v110 = vsel %vm96, %v87, 0.0
  %v111 = vadd.f32 %v109, %v110
  %v112 = vrot.slane %v111, 4
  %v113 = vadd.f32 %v111, %v112
  %v114 = vrot.slane %v113, 2
  %v115 = vadd.f32 %v113, %v114
  %v116 = vrot.slane %v115, 1
  %v117 = vadd.f32 %v115, %v116
  %v118 = vsel %vm96, %v88, 0.0
  %v119 = vsel %vm96, %v89, 0.0
  %v120 = vadd.f32 %v118, %v119
  %v121 = vsel %vm96, %v90, 0.0
  %v122 = vadd.f32 %v120, %v121
  %v123 = vsel %vm96, %v91, 0.0
  %v124 = vadd.f32 %v122, %v123
  %v125 = vsel %vm96, %v92, 0.0
  %v126 = vadd.f32 %v124, %v125
  %v127 = vsel %vm96, %v93, 0.0
  %v128 = vadd.f32 %v126, %v127
  %v129 = vsel %vm96, %v94, 0.0
  %v130 = vadd.f32 %v128, %v129
  %v131 = vsel %vm96, %v95, 0.0
  %v132 = vadd.f32 %v130, %v131
  %v133 = vrot.slane %v132, 4
  %v134 = vadd.f32 %v132, %v133
  %v135 = vrot.slane %v134, 2
  %v136 = vadd.f32 %v134, %v135
  %v137 = vrot.slane %v136, 1
  %v138 = vadd.f32 %v136, %v137
  %v139 = vadd.f32 %v117, 0.0
  %v140 = vadd.f32 %v138, 0.0
  %v141 = vld [vmem:[%s0 + $0x40] sm:$0xff]
  %v142 = vld [vmem:[%s0 + $0x48] sm:$0xff]
  %v143 = vld [vmem:[%s0 + $0x50] sm:$0xff]
  %v144 = vld [vmem:[%s0 + $0x58] sm:$0xff]
  %v145 = vld [vmem:[%s0 + $0x60] sm:$0xff]
  %v146 = vld [vmem:[%s0 + $0x68] sm:$0xff]
  %v147 = vld [vmem:[%s0 + $0x70] sm:$0xff]
  %v148 = vld [vmem:[%s0 + $0x78] sm:$0xff]
  %v149 = vld [vmem:[%s0 + $0x180] sm:$0xff]
  %v150 = vld [vmem:[%s0 + $0x188] sm:$0xff]
  %v151 = vld [vmem:[%s0 + $0x190] sm:$0xff]
  %v152 = vld [vmem:[%s0 + $0x198] sm:$0xff]
  %v153 = vld [vmem:[%s0 + $0x1a0] sm:$0xff]
  %v154 = vld [vmem:[%s0 + $0x1a8] sm:$0xff]
  %v155 = vld [vmem:[%s0 + $0x1b0] sm:$0xff]
  %v156 = vld [vmem:[%s0 + $0x1b8] sm:$0xff]
  %v157 = vld [vmem:[%s1 + $0x40] sm:$0xff]
  %v158 = vld [vmem:[%s1 + $0x48] sm:$0xff]
  %v159 = vld [vmem:[%s1 + $0x50] sm:$0xff]
  %v160 = vld [vmem:[%s1 + $0x58] sm:$0xff]
  %v161 = vld [vmem:[%s1 + $0x60] sm:$0xff]
  %v162 = vld [vmem:[%s1 + $0x68] sm:$0xff]
  %v163 = vld [vmem:[%s1 + $0x70] sm:$0xff]
  %v164 = vld [vmem:[%s1 + $0x78] sm:$0xff]
  %166 = vset.pattern.permute.xlu0 0
  %167 = vperm.xlu0 %166, %v157
  %v168 = vpop.permute.xlu0 %167
  %171 = vset.pattern.permute.xlu0 0
  %172 = vperm.xlu0 %171, %v158
  %v173 = vpop.permute.xlu0 %172
  %176 = vset.pattern.permute.xlu0 0
  %177 = vperm.xlu0 %176, %v159
  %v178 = vpop.permute.xlu0 %177
  %181 = vset.pattern.permute.xlu0 0
  %182 = vperm.xlu0 %181, %v160
  %v183 = vpop.permute.xlu0 %182
  %186 = vset.pattern.permute.xlu0 0
  %187 = vperm.xlu0 %186, %v161
  %v188 = vpop.permute.xlu0 %187
  %191 = vset.pattern.permute.xlu0 0
  %192 = vperm.xlu0 %191, %v162
  %v193 = vpop.permute.xlu0 %192
  %196 = vset.pattern.permute.xlu0 0
  %197 = vperm.xlu0 %196, %v163
  %v198 = vpop.permute.xlu0 %197
  %201 = vset.pattern.permute.xlu0 0
  %202 = vperm.xlu0 %201, %v164
  %v203 = vpop.permute.xlu0 %202
  %v205 = vmul.f32 %v141, %v168
  %v206 = vmul.f32 %v142, %v173
  %v207 = vmul.f32 %v143, %v178
  %v208 = vmul.f32 %v144, %v183
  %v209 = vmul.f32 %v145, %v188
  %v210 = vmul.f32 %v146, %v193
  %v211 = vmul.f32 %v147, %v198
  %v212 = vmul.f32 %v148, %v203
  %v213 = vmul.f32 %v149, %v168
  %v214 = vmul.f32 %v150, %v173
  %v215 = vmul.f32 %v151, %v178
  %v216 = vmul.f32 %v152, %v183
  %v217 = vmul.f32 %v153, %v188
  %v218 = vmul.f32 %v154, %v193
  %v219 = vmul.f32 %v155, %v198
  %v220 = vmul.f32 %v156, %v203
  %v221 = vsel %vm96, %v205, 0.0
  %v222 = vsel %vm96, %v206, 0.0
  %v223 = vadd.f32 %v221, %v222
  %v224 = vsel %vm96, %v207, 0.0
  %v225 = vadd.f32 %v223, %v224
  %v226 = vsel %vm96, %v208, 0.0
  %v227 = vadd.f32 %v225, %v226
  %v228 = vsel %vm96, %v209, 0.0
  %v229 = vadd.f32 %v227, %v228
  %v230 = vsel %vm96, %v210, 0.0
  %v231 = vadd.f32 %v229, %v230
  %v232 = vsel %vm96, %v211, 0.0
  %v233 = vadd.f32 %v231, %v232
  %v234 = vsel %vm96, %v212, 0.0
  %v235 = vadd.f32 %v233, %v234
  %v236 = vrot.slane %v235, 4
  %v237 = vadd.f32 %v235, %v236
  %v238 = vrot.slane %v237, 2
  %v239 = vadd.f32 %v237, %v238
  %v240 = vrot.slane %v239, 1
  %v241 = vadd.f32 %v239, %v240
  %v242 = vsel %vm96, %v213, 0.0
  %v243 = vsel %vm96, %v214, 0.0
  %v244 = vadd.f32 %v242, %v243
  %v245 = vsel %vm96, %v215, 0.0
  %v246 = vadd.f32 %v244, %v245
  %v247 = vsel %vm96, %v216, 0.0
  %v248 = vadd.f32 %v246, %v247
  %v249 = vsel %vm96, %v217, 0.0
  %v250 = vadd.f32 %v248, %v249
  %v251 = vsel %vm96, %v218, 0.0
  %v252 = vadd.f32 %v250, %v251
  %v253 = vsel %vm96, %v219, 0.0
  %v254 = vadd.f32 %v252, %v253
  %v255 = vsel %vm96, %v220, 0.0
  %v256 = vadd.f32 %v254, %v255
  %v257 = vrot.slane %v256, 4
  %v258 = vadd.f32 %v256, %v257
  %v259 = vrot.slane %v258, 2
  %v260 = vadd.f32 %v258, %v259
  %v261 = vrot.slane %v260, 1
  %v262 = vadd.f32 %v260, %v261
  %v263 = vadd.f32 %v139, %v241
  %v264 = vadd.f32 %v140, %v262
  %v265 = vld [vmem:[%s0 + $0x80] sm:$0xff]
  %v266 = vld [vmem:[%s0 + $0x88] sm:$0xff]
  %v267 = vld [vmem:[%s0 + $0x90] sm:$0xff]
  %v268 = vld [vmem:[%s0 + $0x98] sm:$0xff]
  %v269 = vld [vmem:[%s0 + $0xa0] sm:$0xff]
  %v270 = vld [vmem:[%s0 + $0xa8] sm:$0xff]
  %v271 = vld [vmem:[%s0 + $0xb0] sm:$0xff]
  %v272 = vld [vmem:[%s0 + $0xb8] sm:$0xff]
  %v273 = vld [vmem:[%s0 + $0x1c0] sm:$0xff]
  %v274 = vld [vmem:[%s0 + $0x1c8] sm:$0xff]
  %v275 = vld [vmem:[%s0 + $0x1d0] sm:$0xff]
  %v276 = vld [vmem:[%s0 + $0x1d8] sm:$0xff]
  %v277 = vld [vmem:[%s0 + $0x1e0] sm:$0xff]
  %v278 = vld [vmem:[%s0 + $0x1e8] sm:$0xff]
  %v279 = vld [vmem:[%s0 + $0x1f0] sm:$0xff]
  %v280 = vld [vmem:[%s0 + $0x1f8] sm:$0xff]
  %v281 = vld [vmem:[%s1 + $0x80] sm:$0xff]
  %v282 = vld [vmem:[%s1 + $0x88] sm:$0xff]
  %v283 = vld [vmem:[%s1 + $0x90] sm:$0xff]
  %v284 = vld [vmem:[%s1 + $0x98] sm:$0xff]
  %v285 = vld [vmem:[%s1 + $0xa0] sm:$0xff]
  %v286 = vld [vmem:[%s1 + $0xa8] sm:$0xff]
  %v287 = vld [vmem:[%s1 + $0xb0] sm:$0xff]
  %v288 = vld [vmem:[%s1 + $0xb8] sm:$0xff]
  %290 = vset.pattern.permute.xlu0 0
  %291 = vperm.xlu0 %290, %v281
  %v292 = vpop.permute.xlu0 %291
  %295 = vset.pattern.permute.xlu0 0
  %296 = vperm.xlu0 %295, %v282
  %v297 = vpop.permute.xlu0 %296
  %300 = vset.pattern.permute.xlu0 0
  %301 = vperm.xlu0 %300, %v283
  %v302 = vpop.permute.xlu0 %301
  %305 = vset.pattern.permute.xlu0 0
  %306 = vperm.xlu0 %305, %v284
  %v307 = vpop.permute.xlu0 %306
  %310 = vset.pattern.permute.xlu0 0
  %311 = vperm.xlu0 %310, %v285
  %v312 = vpop.permute.xlu0 %311
  %315 = vset.pattern.permute.xlu0 0
  %316 = vperm.xlu0 %315, %v286
  %v317 = vpop.permute.xlu0 %316
  %320 = vset.pattern.permute.xlu0 0
  %321 = vperm.xlu0 %320, %v287
  %v322 = vpop.permute.xlu0 %321
  %325 = vset.pattern.permute.xlu0 0
  %326 = vperm.xlu0 %325, %v288
  %v327 = vpop.permute.xlu0 %326
  %v329 = vmul.f32 %v265, %v292
  %v330 = vmul.f32 %v266, %v297
  %v331 = vmul.f32 %v267, %v302
  %v332 = vmul.f32 %v268, %v307
  %v333 = vmul.f32 %v269, %v312
  %v334 = vmul.f32 %v270, %v317
  %v335 = vmul.f32 %v271, %v322
  %v336 = vmul.f32 %v272, %v327
  %v337 = vmul.f32 %v273, %v292
  %v338 = vmul.f32 %v274, %v297
  %v339 = vmul.f32 %v275, %v302
  %v340 = vmul.f32 %v276, %v307
  %v341 = vmul.f32 %v277, %v312
  %v342 = vmul.f32 %v278, %v317
  %v343 = vmul.f32 %v279, %v322
  %v344 = vmul.f32 %v280, %v327
  %v345 = vsel %vm96, %v329, 0.0
  %v346 = vsel %vm96, %v330, 0.0
  %v347 = vadd.f32 %v345, %v346
  %v348 = vsel %vm96, %v331, 0.0
  %v349 = vadd.f32 %v347, %v348
  %v350 = vsel %vm96, %v332, 0.0
  %v351 = vadd.f32 %v349, %v350
  %v352 = vsel %vm96, %v333, 0.0
  %v353 = vadd.f32 %v351, %v352
  %v354 = vsel %vm96, %v334, 0.0
  %v355 = vadd.f32 %v353, %v354
  %v356 = vsel %vm96, %v335, 0.0
  %v357 = vadd.f32 %v355, %v356
  %v358 = vsel %vm96, %v336, 0.0
  %v359 = vadd.f32 %v357, %v358
  %v360 = vrot.slane %v359, 4
  %v361 = vadd.f32 %v359, %v360
  %v362 = vrot.slane %v361, 2
  %v363 = vadd.f32 %v361, %v362
  %v364 = vrot.slane %v363, 1
  %v365 = vadd.f32 %v363, %v364
  %v366 = vsel %vm96, %v337, 0.0
  %v367 = vsel %vm96, %v338, 0.0
  %v368 = vadd.f32 %v366, %v367
  %v369 = vsel %vm96, %v339, 0.0
  %v370 = vadd.f32 %v368, %v369
  %v371 = vsel %vm96, %v340, 0.0
  %v372 = vadd.f32 %v370, %v371
  %v373 = vsel %vm96, %v341, 0.0
  %v374 = vadd.f32 %v372, %v373
  %v375 = vsel %vm96, %v342, 0.0
  %v376 = vadd.f32 %v374, %v375
  %v377 = vsel %vm96, %v343, 0.0
  %v378 = vadd.f32 %v376, %v377
  %v379 = vsel %vm96, %v344, 0.0
  %v380 = vadd.f32 %v378, %v379
  %v381 = vrot.slane %v380, 4
  %v382 = vadd.f32 %v380, %v381
  %v383 = vrot.slane %v382, 2
  %v384 = vadd.f32 %v382, %v383
  %v385 = vrot.slane %v384, 1
  %v386 = vadd.f32 %v384, %v385
  %v387 = vadd.f32 %v263, %v365
  %v388 = vadd.f32 %v264, %v386
  %v389 = vld [vmem:[%s0 + $0xc0] sm:$0xff]
  %v390 = vld [vmem:[%s0 + $0xc8] sm:$0xff]
  %v391 = vld [vmem:[%s0 + $0xd0] sm:$0xff]
  %v392 = vld [vmem:[%s0 + $0xd8] sm:$0xff]
  %v393 = vld [vmem:[%s0 + $0xe0] sm:$0xff]
  %v394 = vld [vmem:[%s0 + $0xe8] sm:$0xff]
  %v395 = vld [vmem:[%s0 + $0xf0] sm:$0xff]
  %v396 = vld [vmem:[%s0 + $0xf8] sm:$0xff]
  %v397 = vld [vmem:[%s0 + $0x200] sm:$0xff]
  %v398 = vld [vmem:[%s0 + $0x208] sm:$0xff]
  %v399 = vld [vmem:[%s0 + $0x210] sm:$0xff]
  %v400 = vld [vmem:[%s0 + $0x218] sm:$0xff]
  %v401 = vld [vmem:[%s0 + $0x220] sm:$0xff]
  %v402 = vld [vmem:[%s0 + $0x228] sm:$0xff]
  %v403 = vld [vmem:[%s0 + $0x230] sm:$0xff]
  %v404 = vld [vmem:[%s0 + $0x238] sm:$0xff]
  %v405 = vld [vmem:[%s1 + $0xc0] sm:$0xff]
  %v406 = vld [vmem:[%s1 + $0xc8] sm:$0xff]
  %v407 = vld [vmem:[%s1 + $0xd0] sm:$0xff]
  %v408 = vld [vmem:[%s1 + $0xd8] sm:$0xff]
  %v409 = vld [vmem:[%s1 + $0xe0] sm:$0xff]
  %v410 = vld [vmem:[%s1 + $0xe8] sm:$0xff]
  %v411 = vld [vmem:[%s1 + $0xf0] sm:$0xff]
  %v412 = vld [vmem:[%s1 + $0xf8] sm:$0xff]
  %414 = vset.pattern.permute.xlu0 0
  %415 = vperm.xlu0 %414, %v405
  %v416 = vpop.permute.xlu0 %415
  %419 = vset.pattern.permute.xlu0 0
  %420 = vperm.xlu0 %419, %v406
  %v421 = vpop.permute.xlu0 %420
  %424 = vset.pattern.permute.xlu0 0
  %425 = vperm.xlu0 %424, %v407
  %v426 = vpop.permute.xlu0 %425
  %429 = vset.pattern.permute.xlu0 0
  %430 = vperm.xlu0 %429, %v408
  %v431 = vpop.permute.xlu0 %430
  %434 = vset.pattern.permute.xlu0 0
  %435 = vperm.xlu0 %434, %v409
  %v436 = vpop.permute.xlu0 %435
  %439 = vset.pattern.permute.xlu0 0
  %440 = vperm.xlu0 %439, %v410
  %v441 = vpop.permute.xlu0 %440
  %444 = vset.pattern.permute.xlu0 0
  %445 = vperm.xlu0 %444, %v411
  %v446 = vpop.permute.xlu0 %445
  %449 = vset.pattern.permute.xlu0 0
  %450 = vperm.xlu0 %449, %v412
  %v451 = vpop.permute.xlu0 %450
  %v453 = vmul.f32 %v389, %v416
  %v454 = vmul.f32 %v390, %v421
  %v455 = vmul.f32 %v391, %v426
  %v456 = vmul.f32 %v392, %v431
  %v457 = vmul.f32 %v393, %v436
  %v458 = vmul.f32 %v394, %v441
  %v459 = vmul.f32 %v395, %v446
  %v460 = vmul.f32 %v396, %v451
  %v461 = vmul.f32 %v397, %v416
  %v462 = vmul.f32 %v398, %v421
  %v463 = vmul.f32 %v399, %v426
  %v464 = vmul.f32 %v400, %v431
  %v465 = vmul.f32 %v401, %v436
  %v466 = vmul.f32 %v402, %v441
  %v467 = vmul.f32 %v403, %v446
  %v468 = vmul.f32 %v404, %v451
  %v469 = vsel %vm96, %v453, 0.0
  %v470 = vsel %vm96, %v454, 0.0
  %v471 = vadd.f32 %v469, %v470
  %v472 = vsel %vm96, %v455, 0.0
  %v473 = vadd.f32 %v471, %v472
  %v474 = vsel %vm96, %v456, 0.0
  %v475 = vadd.f32 %v473, %v474
  %v476 = vsel %vm96, %v457, 0.0
  %v477 = vadd.f32 %v475, %v476
  %v478 = vsel %vm96, %v458, 0.0
  %v479 = vadd.f32 %v477, %v478
  %v480 = vsel %vm96, %v459, 0.0
  %v481 = vadd.f32 %v479, %v480
  %v482 = vsel %vm96, %v460, 0.0
  %v483 = vadd.f32 %v481, %v482
  %v484 = vrot.slane %v483, 4
  %v485 = vadd.f32 %v483, %v484
  %v486 = vrot.slane %v485, 2
  %v487 = vadd.f32 %v485, %v486
  %v488 = vrot.slane %v487, 1
  %v489 = vadd.f32 %v487, %v488
  %v490 = vsel %vm96, %v461, 0.0
  %v491 = vsel %vm96, %v462, 0.0
  %v492 = vadd.f32 %v490, %v491
  %v493 = vsel %vm96, %v463, 0.0
  %v494 = vadd.f32 %v492, %v493
  %v495 = vsel %vm96, %v464, 0.0
  %v496 = vadd.f32 %v494, %v495
  %v497 = vsel %vm96, %v465, 0.0
  %v498 = vadd.f32 %v496, %v497
  %v499 = vsel %vm96, %v466, 0.0
  %v500 = vadd.f32 %v498, %v499
  %v501 = vsel %vm96, %v467, 0.0
  %v502 = vadd.f32 %v500, %v501
  %v503 = vsel %vm96, %v468, 0.0
  %v504 = vadd.f32 %v502, %v503
  %v505 = vrot.slane %v504, 4
  %v506 = vadd.f32 %v504, %v505
  %v507 = vrot.slane %v506, 2
  %v508 = vadd.f32 %v506, %v507
  %v509 = vrot.slane %v508, 1
  %v510 = vadd.f32 %v508, %v509
  %v511 = vadd.f32 %v387, %v489
  %v512 = vadd.f32 %v388, %v510
  %v513 = vld [vmem:[%s0 + $0x100] sm:$0xff]
  %v514 = vld [vmem:[%s0 + $0x108] sm:$0xff]
  %v515 = vld [vmem:[%s0 + $0x110] sm:$0xff]
  %v516 = vld [vmem:[%s0 + $0x118] sm:$0xff]
  %v517 = vld [vmem:[%s0 + $0x120] sm:$0xff]
  %v518 = vld [vmem:[%s0 + $0x128] sm:$0xff]
  %v519 = vld [vmem:[%s0 + $0x130] sm:$0xff]
  %v520 = vld [vmem:[%s0 + $0x138] sm:$0xff]
  %v521 = vld [vmem:[%s0 + $0x240] sm:$0xff]
  %v522 = vld [vmem:[%s0 + $0x248] sm:$0xff]
  %v523 = vld [vmem:[%s0 + $0x250] sm:$0xff]
  %v524 = vld [vmem:[%s0 + $0x258] sm:$0xff]
  %v525 = vld [vmem:[%s0 + $0x260] sm:$0xff]
  %v526 = vld [vmem:[%s0 + $0x268] sm:$0xff]
  %v527 = vld [vmem:[%s0 + $0x270] sm:$0xff]
  %v528 = vld [vmem:[%s0 + $0x278] sm:$0xff]
  %v529 = vld [vmem:[%s1 + $0x100] sm:$0xff]
  %v530 = vld [vmem:[%s1 + $0x108] sm:$0xff]
  %v531 = vld [vmem:[%s1 + $0x110] sm:$0xff]
  %v532 = vld [vmem:[%s1 + $0x118] sm:$0xff]
  %v533 = vld [vmem:[%s1 + $0x120] sm:$0xff]
  %v534 = vld [vmem:[%s1 + $0x128] sm:$0xff]
  %v535 = vld [vmem:[%s1 + $0x130] sm:$0xff]
  %v536 = vld [vmem:[%s1 + $0x138] sm:$0xff]
  %538 = vset.pattern.permute.xlu0 0
  %539 = vperm.xlu0 %538, %v529
  %v540 = vpop.permute.xlu0 %539
  %543 = vset.pattern.permute.xlu0 0
  %544 = vperm.xlu0 %543, %v530
  %v545 = vpop.permute.xlu0 %544
  %548 = vset.pattern.permute.xlu0 0
  %549 = vperm.xlu0 %548, %v531
  %v550 = vpop.permute.xlu0 %549
  %553 = vset.pattern.permute.xlu0 0
  %554 = vperm.xlu0 %553, %v532
  %v555 = vpop.permute.xlu0 %554
  %558 = vset.pattern.permute.xlu0 0
  %559 = vperm.xlu0 %558, %v533
  %v560 = vpop.permute.xlu0 %559
  %563 = vset.pattern.permute.xlu0 0
  %564 = vperm.xlu0 %563, %v534
  %v565 = vpop.permute.xlu0 %564
  %568 = vset.pattern.permute.xlu0 0
  %569 = vperm.xlu0 %568, %v535
  %v570 = vpop.permute.xlu0 %569
  %573 = vset.pattern.permute.xlu0 0
  %574 = vperm.xlu0 %573, %v536
  %v575 = vpop.permute.xlu0 %574
  %v577 = vmul.f32 %v513, %v540
  %v578 = vmul.f32 %v514, %v545
  %v579 = vmul.f32 %v515, %v550
  %v580 = vmul.f32 %v516, %v555
  %v581 = vmul.f32 %v517, %v560
  %v582 = vmul.f32 %v518, %v565
  %v583 = vmul.f32 %v519, %v570
  %v584 = vmul.f32 %v520, %v575
  %v585 = vmul.f32 %v521, %v540
  %v586 = vmul.f32 %v522, %v545
  %v587 = vmul.f32 %v523, %v550
  %v588 = vmul.f32 %v524, %v555
  %v589 = vmul.f32 %v525, %v560
  %v590 = vmul.f32 %v526, %v565
  %v591 = vmul.f32 %v527, %v570
  %v592 = vmul.f32 %v528, %v575
  %v593 = vsel %vm96, %v577, 0.0
  %v594 = vsel %vm96, %v578, 0.0
  %v595 = vadd.f32 %v593, %v594
  %v596 = vsel %vm96, %v579, 0.0
  %v597 = vadd.f32 %v595, %v596
  %v598 = vsel %vm96, %v580, 0.0
  %v599 = vadd.f32 %v597, %v598
  %v600 = vsel %vm96, %v581, 0.0
  %v601 = vadd.f32 %v599, %v600
  %v602 = vsel %vm96, %v582, 0.0
  %v603 = vadd.f32 %v601, %v602
  %v604 = vsel %vm96, %v583, 0.0
  %v605 = vadd.f32 %v603, %v604
  %v606 = vsel %vm96, %v584, 0.0
  %v607 = vadd.f32 %v605, %v606
  %v608 = vrot.slane %v607, 4
  %v609 = vadd.f32 %v607, %v608
  %v610 = vrot.slane %v609, 2
  %v611 = vadd.f32 %v609, %v610
  %v612 = vrot.slane %v611, 1
  %v613 = vadd.f32 %v611, %v612
  %v614 = vsel %vm96, %v585, 0.0
  %v615 = vsel %vm96, %v586, 0.0
  %v616 = vadd.f32 %v614, %v615
  %v617 = vsel %vm96, %v587, 0.0
  %v618 = vadd.f32 %v616, %v617
  %v619 = vsel %vm96, %v588, 0.0
  %v620 = vadd.f32 %v618, %v619
  %v621 = vsel %vm96, %v589, 0.0
  %v622 = vadd.f32 %v620, %v621
  %v623 = vsel %vm96, %v590, 0.0
  %v624 = vadd.f32 %v622, %v623
  %v625 = vsel %vm96, %v591, 0.0
  %v626 = vadd.f32 %v624, %v625
  %v627 = vsel %vm96, %v592, 0.0
  %v628 = vadd.f32 %v626, %v627
  %v629 = vrot.slane %v628, 4
  %v630 = vadd.f32 %v628, %v629
  %v631 = vrot.slane %v630, 2
  %v632 = vadd.f32 %v630, %v631
  %v633 = vrot.slane %v632, 1
  %v634 = vadd.f32 %v632, %v633
  %v635 = vadd.f32 %v511, %v613
  %v636 = vadd.f32 %v512, %v634
  %v637 = vstv %s15
  %v638 = vadd.f32 %v635, %v637
  %v639 = vadd.f32 %v636, %v637
  %v640 = vsel %vm96, %v638, -inf
  %641 = vmax.xlane.f32.xlu0 %v640
  %v642 = vpop.xlane.xlu0 %641
  %v643 = vsel %vm96, %v639, -inf
  %644 = vmax.xlane.f32.xlu0 %v643
  %v645 = vpop.xlane.xlu0 %644
  %v646 = vsub.f32 %v638, %v642
  %v647 = vsub.f32 %v639, %v645
  %v648 = vmul.f32 %v646, 1.442695
  %v649 = vpow.pop %v648
  %v650 = vmul.f32 %v647, 1.442695
  %v651 = vpow.pop %v650
  %v652 = vsel %vm96, %v649, 0.0
  %653 = vadd.xlane.f32.xlu0 %v652
  %v654 = vpop.xlane.xlu0 %653
  %v655 = vsel %vm96, %v651, 0.0
  %656 = vadd.xlane.f32.xlu0 %v655
  %v657 = vpop.xlane.xlu0 %656
  %v658 = vrcp.pop %v654
  %v659 = vmul.f32 %v649, %v658
  %v660 = vrcp.pop %v657
  %v661 = vmul.f32 %v651, %v660
  %v662 = vld [vmem:[%s0] sm:$0xff]
  %v663 = vld [vmem:[%s0 + $0x8] sm:$0xff]
  %v664 = vld [vmem:[%s0 + $0x10] sm:$0xff]
  %v665 = vld [vmem:[%s0 + $0x18] sm:$0xff]
  %v666 = vld [vmem:[%s0 + $0x20] sm:$0xff]
  %v667 = vld [vmem:[%s0 + $0x28] sm:$0xff]
  %v668 = vld [vmem:[%s0 + $0x30] sm:$0xff]
  %v669 = vld [vmem:[%s0 + $0x38] sm:$0xff]
  %v670 = vld [vmem:[%s0 + $0x40] sm:$0xff]
  %v671 = vld [vmem:[%s0 + $0x48] sm:$0xff]
  %v672 = vld [vmem:[%s0 + $0x50] sm:$0xff]
  %v673 = vld [vmem:[%s0 + $0x58] sm:$0xff]
  %v674 = vld [vmem:[%s0 + $0x60] sm:$0xff]
  %v675 = vld [vmem:[%s0 + $0x68] sm:$0xff]
  %v676 = vld [vmem:[%s0 + $0x70] sm:$0xff]
  %v677 = vld [vmem:[%s0 + $0x78] sm:$0xff]
  %v678 = vld [vmem:[%s0 + $0x80] sm:$0xff]
  %v679 = vld [vmem:[%s0 + $0x88] sm:$0xff]
  %v680 = vld [vmem:[%s0 + $0x90] sm:$0xff]
  %v681 = vld [vmem:[%s0 + $0x98] sm:$0xff]
  %v682 = vld [vmem:[%s0 + $0xa0] sm:$0xff]
  %v683 = vld [vmem:[%s0 + $0xa8] sm:$0xff]
  %v684 = vld [vmem:[%s0 + $0xb0] sm:$0xff]
  %v685 = vld [vmem:[%s0 + $0xb8] sm:$0xff]
  %v686 = vld [vmem:[%s0 + $0xc0] sm:$0xff]
  %v687 = vld [vmem:[%s0 + $0xc8] sm:$0xff]
  %v688 = vld [vmem:[%s0 + $0xd0] sm:$0xff]
  %v689 = vld [vmem:[%s0 + $0xd8] sm:$0xff]
  %v690 = vld [vmem:[%s0 + $0xe0] sm:$0xff]
  %v691 = vld [vmem:[%s0 + $0xe8] sm:$0xff]
  %v692 = vld [vmem:[%s0 + $0xf0] sm:$0xff]
  %v693 = vld [vmem:[%s0 + $0xf8] sm:$0xff]
  %v694 = vld [vmem:[%s0 + $0x140] sm:$0xff]
  %v695 = vld [vmem:[%s0 + $0x148] sm:$0xff]
  %v696 = vld [vmem:[%s0 + $0x150] sm:$0xff]
  %v697 = vld [vmem:[%s0 + $0x158] sm:$0xff]
  %v698 = vld [vmem:[%s0 + $0x160] sm:$0xff]
  %v699 = vld [vmem:[%s0 + $0x168] sm:$0xff]
  %v700 = vld [vmem:[%s0 + $0x170] sm:$0xff]
  %v701 = vld [vmem:[%s0 + $0x178] sm:$0xff]
  %v702 = vld [vmem:[%s0 + $0x180] sm:$0xff]
  %v703 = vld [vmem:[%s0 + $0x188] sm:$0xff]
  %v704 = vld [vmem:[%s0 + $0x190] sm:$0xff]
  %v705 = vld [vmem:[%s0 + $0x198] sm:$0xff]
  %v706 = vld [vmem:[%s0 + $0x1a0] sm:$0xff]
  %v707 = vld [vmem:[%s0 + $0x1a8] sm:$0xff]
  %v708 = vld [vmem:[%s0 + $0x1b0] sm:$0xff]
  %v709 = vld [vmem:[%s0 + $0x1b8] sm:$0xff]
  %v710 = vld [vmem:[%s0 + $0x1c0] sm:$0xff]
  %v711 = vld [vmem:[%s0 + $0x1c8] sm:$0xff]
  %v712 = vld [vmem:[%s0 + $0x1d0] sm:$0xff]
  %v713 = vld [vmem:[%s0 + $0x1d8] sm:$0xff]
  %v714 = vld [vmem:[%s0 + $0x1e0] sm:$0xff]
  %v715 = vld [vmem:[%s0 + $0x1e8] sm:$0xff]
  %v716 = vld [vmem:[%s0 + $0x1f0] sm:$0xff]
  %v717 = vld [vmem:[%s0 + $0x1f8] sm:$0xff]
  %v718 = vld [vmem:[%s0 + $0x200] sm:$0xff]
  %v719 = vld [vmem:[%s0 + $0x208] sm:$0xff]
  %v720 = vld [vmem:[%s0 + $0x210] sm:$0xff]
  %v721 = vld [vmem:[%s0 + $0x218] sm:$0xff]
  %v722 = vld [vmem:[%s0 + $0x220] sm:$0xff]
  %v723 = vld [vmem:[%s0 + $0x228] sm:$0xff]
  %v724 = vld [vmem:[%s0 + $0x230] sm:$0xff]
  %v725 = vld [vmem:[%s0 + $0x238] sm:$0xff]
  %v726 = vmul.f32 %v662, %v659
  %v727 = vmul.f32 %v663, %v659
  %v728 = vmul.f32 %v664, %v659
  %v729 = vmul.f32 %v665, %v659
  %v730 = vmul.f32 %v666, %v659
  %v731 = vmul.f32 %v667, %v659
  %v732 = vmul.f32 %v668, %v659
  %v733 = vmul.f32 %v669, %v659
  %v734 = vmul.f32 %v670, %v659
  %v735 = vmul.f32 %v671, %v659
  %v736 = vmul.f32 %v672, %v659
  %v737 = vmul.f32 %v673, %v659
  %v738 = vmul.f32 %v674, %v659
  %v739 = vmul.f32 %v675, %v659
  %v740 = vmul.f32 %v676, %v659
  %v741 = vmul.f32 %v677, %v659
  %v742 = vmul.f32 %v678, %v659
  %v743 = vmul.f32 %v679, %v659
  %v744 = vmul.f32 %v680, %v659
  %v745 = vmul.f32 %v681, %v659
  %v746 = vmul.f32 %v682, %v659
  %v747 = vmul.f32 %v683, %v659
  %v748 = vmul.f32 %v684, %v659
  %v749 = vmul.f32 %v685, %v659
  %v750 = vmul.f32 %v686, %v659
  %v751 = vmul.f32 %v687, %v659
  %v752 = vmul.f32 %v688, %v659
  %v753 = vmul.f32 %v689, %v659
  %v754 = vmul.f32 %v690, %v659
  %v755 = vmul.f32 %v691, %v659
  %v756 = vmul.f32 %v692, %v659
  %v757 = vmul.f32 %v693, %v659
  %v758 = vmul.f32 %v513, %v659
  %v759 = vmul.f32 %v514, %v659
  %v760 = vmul.f32 %v515, %v659
  %v761 = vmul.f32 %v516, %v659
  %v762 = vmul.f32 %v517, %v659
  %v763 = vmul.f32 %v518, %v659
  %v764 = vmul.f32 %v519, %v659
  %v765 = vmul.f32 %v520, %v659
  %v766 = vmul.f32 %v694, %v661
  %v767 = vmul.f32 %v695, %v661
  %v768 = vmul.f32 %v696, %v661
  %v769 = vmul.f32 %v697, %v661
  %v770 = vmul.f32 %v698, %v661
  %v771 = vmul.f32 %v699, %v661
  %v772 = vmul.f32 %v700, %v661
  %v773 = vmul.f32 %v701, %v661
  %v774 = vmul.f32 %v702, %v661
  %v775 = vmul.f32 %v703, %v661
  %v776 = vmul.f32 %v704, %v661
  %v777 = vmul.f32 %v705, %v661
  %v778 = vmul.f32 %v706, %v661
  %v779 = vmul.f32 %v707, %v661
  %v780 = vmul.f32 %v708, %v661
  %v781 = vmul.f32 %v709, %v661
  %v782 = vmul.f32 %v710, %v661
  %v783 = vmul.f32 %v711, %v661
  %v784 = vmul.f32 %v712, %v661
  %v785 = vmul.f32 %v713, %v661
  %v786 = vmul.f32 %v714, %v661
  %v787 = vmul.f32 %v715, %v661
  %v788 = vmul.f32 %v716, %v661
  %v789 = vmul.f32 %v717, %v661
  %v790 = vmul.f32 %v718, %v661
  %v791 = vmul.f32 %v719, %v661
  %v792 = vmul.f32 %v720, %v661
  %v793 = vmul.f32 %v721, %v661
  %v794 = vmul.f32 %v722, %v661
  %v795 = vmul.f32 %v723, %v661
  %v796 = vmul.f32 %v724, %v661
  %v797 = vmul.f32 %v725, %v661
  %v798 = vmul.f32 %v521, %v661
  %v799 = vmul.f32 %v522, %v661
  %v800 = vmul.f32 %v523, %v661
  %v801 = vmul.f32 %v524, %v661
  %v802 = vmul.f32 %v525, %v661
  %v803 = vmul.f32 %v526, %v661
  %v804 = vmul.f32 %v527, %v661
  %v805 = vmul.f32 %v528, %v661
  %806 = vst.msk [vmem:[%s3] sm:$0xff] %vm96, %v726
  %807 = vst.msk [vmem:[%s3 + $0x8] sm:$0xff] %vm96, %v727
  %808 = vst.msk [vmem:[%s3 + $0x10] sm:$0xff] %vm96, %v728
  %809 = vst.msk [vmem:[%s3 + $0x18] sm:$0xff] %vm96, %v729
  %810 = vst.msk [vmem:[%s3 + $0x20] sm:$0xff] %vm96, %v730
  %811 = vst.msk [vmem:[%s3 + $0x28] sm:$0xff] %vm96, %v731
  %812 = vst.msk [vmem:[%s3 + $0x30] sm:$0xff] %vm96, %v732
  %813 = vst.msk [vmem:[%s3 + $0x38] sm:$0xff] %vm96, %v733
  %814 = vst.msk [vmem:[%s3 + $0x40] sm:$0xff] %vm96, %v734
  %815 = vst.msk [vmem:[%s3 + $0x48] sm:$0xff] %vm96, %v735
  %816 = vst.msk [vmem:[%s3 + $0x50] sm:$0xff] %vm96, %v736
  %817 = vst.msk [vmem:[%s3 + $0x58] sm:$0xff] %vm96, %v737
  %818 = vst.msk [vmem:[%s3 + $0x60] sm:$0xff] %vm96, %v738
  %819 = vst.msk [vmem:[%s3 + $0x68] sm:$0xff] %vm96, %v739
  %820 = vst.msk [vmem:[%s3 + $0x70] sm:$0xff] %vm96, %v740
  %821 = vst.msk [vmem:[%s3 + $0x78] sm:$0xff] %vm96, %v741
  %822 = vst.msk [vmem:[%s3 + $0x80] sm:$0xff] %vm96, %v742
  %823 = vst.msk [vmem:[%s3 + $0x88] sm:$0xff] %vm96, %v743
  %824 = vst.msk [vmem:[%s3 + $0x90] sm:$0xff] %vm96, %v744
  %825 = vst.msk [vmem:[%s3 + $0x98] sm:$0xff] %vm96, %v745
  %826 = vst.msk [vmem:[%s3 + $0xa0] sm:$0xff] %vm96, %v746
  %827 = vst.msk [vmem:[%s3 + $0xa8] sm:$0xff] %vm96, %v747
  %828 = vst.msk [vmem:[%s3 + $0xb0] sm:$0xff] %vm96, %v748
  %829 = vst.msk [vmem:[%s3 + $0xb8] sm:$0xff] %vm96, %v749
  %830 = vst.msk [vmem:[%s3 + $0xc0] sm:$0xff] %vm96, %v750
  %831 = vst.msk [vmem:[%s3 + $0xc8] sm:$0xff] %vm96, %v751
  %832 = vst.msk [vmem:[%s3 + $0xd0] sm:$0xff] %vm96, %v752
  %833 = vst.msk [vmem:[%s3 + $0xd8] sm:$0xff] %vm96, %v753
  %834 = vst.msk [vmem:[%s3 + $0xe0] sm:$0xff] %vm96, %v754
  %835 = vst.msk [vmem:[%s3 + $0xe8] sm:$0xff] %vm96, %v755
  %836 = vst.msk [vmem:[%s3 + $0xf0] sm:$0xff] %vm96, %v756
  %837 = vst.msk [vmem:[%s3 + $0xf8] sm:$0xff] %vm96, %v757
  %838 = vst.msk [vmem:[%s3 + $0x100] sm:$0xff] %vm96, %v758
  %839 = vst.msk [vmem:[%s3 + $0x108] sm:$0xff] %vm96, %v759
  %840 = vst.msk [vmem:[%s3 + $0x110] sm:$0xff] %vm96, %v760
  %841 = vst.msk [vmem:[%s3 + $0x118] sm:$0xff] %vm96, %v761
  %842 = vst.msk [vmem:[%s3 + $0x120] sm:$0xff] %vm96, %v762
  %843 = vst.msk [vmem:[%s3 + $0x128] sm:$0xff] %vm96, %v763
  %844 = vst.msk [vmem:[%s3 + $0x130] sm:$0xff] %vm96, %v764
  %845 = vst.msk [vmem:[%s3 + $0x138] sm:$0xff] %vm96, %v765
  %846 = vst.msk [vmem:[%s3 + $0x140] sm:$0xff] %vm96, %v766
  %847 = vst.msk [vmem:[%s3 + $0x148] sm:$0xff] %vm96, %v767
  %848 = vst.msk [vmem:[%s3 + $0x150] sm:$0xff] %vm96, %v768
  %849 = vst.msk [vmem:[%s3 + $0x158] sm:$0xff] %vm96, %v769
  %850 = vst.msk [vmem:[%s3 + $0x160] sm:$0xff] %vm96, %v770
  %851 = vst.msk [vmem:[%s3 + $0x168] sm:$0xff] %vm96, %v771
  %852 = vst.msk [vmem:[%s3 + $0x170] sm:$0xff] %vm96, %v772
  %853 = vst.msk [vmem:[%s3 + $0x178] sm:$0xff] %vm96, %v773
  %854 = vst.msk [vmem:[%s3 + $0x180] sm:$0xff] %vm96, %v774
  %855 = vst.msk [vmem:[%s3 + $0x188] sm:$0xff] %vm96, %v775
  %856 = vst.msk [vmem:[%s3 + $0x190] sm:$0xff] %vm96, %v776
  %857 = vst.msk [vmem:[%s3 + $0x198] sm:$0xff] %vm96, %v777
  %858 = vst.msk [vmem:[%s3 + $0x1a0] sm:$0xff] %vm96, %v778
  %859 = vst.msk [vmem:[%s3 + $0x1a8] sm:$0xff] %vm96, %v779
  %860 = vst.msk [vmem:[%s3 + $0x1b0] sm:$0xff] %vm96, %v780
  %861 = vst.msk [vmem:[%s3 + $0x1b8] sm:$0xff] %vm96, %v781
  %862 = vst.msk [vmem:[%s3 + $0x1c0] sm:$0xff] %vm96, %v782
  %863 = vst.msk [vmem:[%s3 + $0x1c8] sm:$0xff] %vm96, %v783
  %864 = vst.msk [vmem:[%s3 + $0x1d0] sm:$0xff] %vm96, %v784
  %865 = vst.msk [vmem:[%s3 + $0x1d8] sm:$0xff] %vm96, %v785
  %866 = vst.msk [vmem:[%s3 + $0x1e0] sm:$0xff] %vm96, %v786
  %867 = vst.msk [vmem:[%s3 + $0x1e8] sm:$0xff] %vm96, %v787
  %868 = vst.msk [vmem:[%s3 + $0x1f0] sm:$0xff] %vm96, %v788
  %869 = vst.msk [vmem:[%s3 + $0x1f8] sm:$0xff] %vm96, %v789
  %870 = vst.msk [vmem:[%s3 + $0x200] sm:$0xff] %vm96, %v790
  %871 = vst.msk [vmem:[%s3 + $0x208] sm:$0xff] %vm96, %v791
  %872 = vst.msk [vmem:[%s3 + $0x210] sm:$0xff] %vm96, %v792
  %873 = vst.msk [vmem:[%s3 + $0x218] sm:$0xff] %vm96, %v793
  %874 = vst.msk [vmem:[%s3 + $0x220] sm:$0xff] %vm96, %v794
  %875 = vst.msk [vmem:[%s3 + $0x228] sm:$0xff] %vm96, %v795
  %876 = vst.msk [vmem:[%s3 + $0x230] sm:$0xff] %vm96, %v796
  %877 = vst.msk [vmem:[%s3 + $0x238] sm:$0xff] %vm96, %v797
  %878 = vst.msk [vmem:[%s3 + $0x240] sm:$0xff] %vm96, %v798
  %879 = vst.msk [vmem:[%s3 + $0x248] sm:$0xff] %vm96, %v799
  %880 = vst.msk [vmem:[%s3 + $0x250] sm:$0xff] %vm96, %v800
  %881 = vst.msk [vmem:[%s3 + $0x258] sm:$0xff] %vm96, %v801
  %882 = vst.msk [vmem:[%s3 + $0x260] sm:$0xff] %vm96, %v802
  %883 = vst.msk [vmem:[%s3 + $0x268] sm:$0xff] %vm96, %v803
  %884 = vst.msk [vmem:[%s3 + $0x270] sm:$0xff] %vm96, %v804
  %885 = vst.msk [vmem:[%s3 + $0x278] sm:$0xff] %vm96, %v805
  // Predicated region
  $region14: #{tpu_custom_call.1} parent=0 // pred_check
    _
  $region15: #{tpu_custom_call.1} parent=0 // pred_check_branch
    %887 = sbr.rel (0) target = $region17
  $region16: #{tpu_custom_call.1} parent=0 // pred_region
    _
  $region17: #{tpu_custom_call.1} parent=0 // pred_fallthru
    _
  // Predicated region
  $region18: #{tpu_custom_call.1} parent=0 // pred_check
    _
  $region19: #{tpu_custom_call.1} parent=0 // pred_check_branch
    %889 = sbr.rel (0) target = $region21
  $region20: #{tpu_custom_call.1} parent=0 // pred_region
    _
  $region21: #{tpu_custom_call.1} parent=0 // pred_fallthru
    _

</llo_original>
